<compile_context>
chip_gen: v5e
topology: v5e:2x2
jax: 0.10.0
libtpu: 0.0.40
codegen_flags: <defaults>
</compile_context>

<pallas_src>
import functools

import jax
import jax.numpy as jnp
import numpy as np
from jax.experimental import pallas as pl
from jax.experimental.pallas import tpu as pltpu


def _lc1d_kernel(x_ref, w_ref, b_ref, o_ref, xpad_ref, *,
                 stride, pad_l, pad_r, c_out, l_out):
    """Unfold + locally-connected contraction + bias, lane-dense in VMEM.

    x_ref   : (bb, C_in, L)              input block (one batch tile)
    w_ref   : (K, C_in, C_out*L_out)     pre-transposed weight (tap axis leading)
    b_ref   : (1, C_out*L_out)           bias, fused lane-dense layout
    o_ref   : (bb, 1, C_out*L_out)       output block (lane-dense last axis)
    xpad_ref: (bb, C_in, L+pad_l+pad_r)  VMEM scratch holding the padded input
    """
    bb, c_in, L = x_ref.shape
    k_taps = w_ref.shape[0]
    col = c_out * l_out
    span = (l_out - 1) * stride + 1

    # ---- Fold F.pad into VMEM with ONE full-width store per step.
    # Megacore-safe: every grid step rewrites the whole scratch, so there is no
    # cross-step / cross-core state to initialize.
    x_blk = x_ref[...]
    if pad_l > 0 or pad_r > 0:
        parts = []
        if pad_l > 0:
            parts.append(jnp.zeros((bb, c_in, pad_l), x_blk.dtype))
        parts.append(x_blk)
        if pad_r > 0:
            parts.append(jnp.zeros((bb, c_in, pad_r), x_blk.dtype))
        xpad_ref[...] = jnp.concatenate(parts, axis=-1)
    else:
        xpad_ref[...] = x_blk

    acc = jnp.zeros((bb, col), jnp.float32)            # lane-dense accumulator

    # Unrolled tap loop (K is tiny -> static unroll).  Per tap:
    #   * one ref-side slice   (bb, C_in, L_out)   -- never load the whole scratch
    #   * one lane replicate   -> (bb, C_in, C_out*L_out)
    #   * one hoisted weight-plane load w_ref[k]
    #   * VALU FMA + one sublane reduce over C_in
    for k in range(k_taps):
        if stride == 1:
            xs_k = xpad_ref[:, :, pl.ds(k, l_out)]             # (bb, C_in, L_out)
        else:
            # TODO(synk): strided slice path is relayout-heavy; untested at stride>1.
            xs_k = xpad_ref[:, :, pl.ds(k, span)][:, :, ::stride]
        xs_k = xs_k.astype(jnp.float32)
        xs_t = jnp.tile(xs_k, (1, 1, c_out))                   # (bb, C_in, COL)
        w_k = w_ref[k].astype(jnp.float32)                     # (C_in, COL)
        acc = acc + jnp.sum(xs_t * w_k[None, :, :], axis=1)    # contract over C_in

    acc = acc + b_ref[...].astype(jnp.float32)                 # bias (bcast over bb)
    o_ref[:, 0, :] = acc.astype(o_ref.dtype)                   # lane-dense store


def locally_connected_1d(x, weight, bias, *, kernel_size, stride, padding,
                         batch_block=8):
    """JAX wrapper: wrapper-side layout plumbing + Pallas call."""
    if isinstance(padding, int):
        padding = (padding, padding)
    B, C_in, L = x.shape
    C_in_w, C_out, K, L_out = weight.shape
    assert C_in_w == C_in and K == kernel_size
    pad_l, pad_r = padding
    L_pad = L + pad_l + pad_r
    assert (L_pad - (kernel_size - 1) - 1) // stride + 1 == L_out
    assert (L_out - 1) * stride + kernel_size <= L_pad
    COL = C_out * L_out

    # One-time layout plumbing:
    #   weight (C_in, C_out, K, L_out) -> (K, C_in, C_out*L_out)  (tap-leading,
    #   fused lane-dense last axis);  bias (C_out, L_out) -> (1, C_out*L_out).
    w_t = jnp.transpose(weight, (2, 0, 1, 3)).reshape(K, C_in, COL)
    b_t = bias.reshape(1, COL)

    # Pad the batch to a multiple of batch_block (padded rows are computed on
    # zeros and dropped after the call).
    nb = (B + batch_block - 1) // batch_block
    B_pad = nb * batch_block
    x_in = jnp.pad(x, ((0, B_pad - B), (0, 0), (0, 0))) if B_pad != B else x

    kernel = functools.partial(
        _lc1d_kernel, stride=stride, pad_l=pad_l, pad_r=pad_r,
        c_out=C_out, l_out=L_out,
    )

    out_flat = pl.pallas_call(
        kernel,
        out_shape=jax.ShapeDtypeStruct((B_pad, 1, COL), x.dtype),
        grid=(nb,),
        in_specs=[
            pl.BlockSpec((batch_block, C_in, L), lambda b: (b, 0, 0)),
            # Grid-invariant weight / bias blocks (constant index_map).
            pl.BlockSpec((K, C_in, COL), lambda b: (0, 0, 0)),
            pl.BlockSpec((1, COL), lambda b: (0, 0)),
        ],
        out_specs=pl.BlockSpec((batch_block, 1, COL), lambda b: (b, 0, 0)),
        scratch_shapes=[pltpu.VMEM((batch_block, C_in, L_pad), x.dtype)],
        compiler_params=pltpu.CompilerParams(
            dimension_semantics=("parallel",)),
    )(x_in, w_t, b_t)

    # Drop batch padding and un-fuse the lane-dense slab back to (B, C_out, L_out).
    return out_flat[:B].reshape(B, C_out, L_out)


if __name__ == "__main__":
    # Small shapes consistent with the module's forward.
    B, C_in, C_out = 2, 4, 8
    seq_len, kernel_size, stride = 16, 3, 1
    padding = (1, 1)
    L_out = (seq_len + sum(padding) - (kernel_size - 1) - 1) // stride + 1  # 16

    key = jax.random.PRNGKey(0)
    kx, kw, kb = jax.random.split(key, 3)
    x = jax.random.normal(kx, (B, C_in, seq_len), dtype=jnp.float32)
    # reset_parameters(): normal(std=0.1) for weight and bias (deterministic here).
    weight = 0.1 * jax.random.normal(
        kw, (C_in, C_out, kernel_size, L_out), dtype=jnp.float32
    )
    bias = 0.1 * jax.random.normal(kb, (C_out, L_out), dtype=jnp.float32)

    out = locally_connected_1d(
        x, weight, bias, kernel_size=kernel_size, stride=stride, padding=padding
    )
    out = jax.block_until_ready(out)

    # Pure-JAX reference reproducing the torch forward exactly.
    x_pad_ref = jnp.pad(x, ((0, 0), (0, 0), padding))
    patches = jnp.stack(
        [
            x_pad_ref[:, :, k: k + (L_out - 1) * stride + 1: stride]
            for k in range(kernel_size)
        ],
        axis=-1,
    )  # (B, C_in, L_out, K)  == rearrange 'b (i k) l -> b i l k'
    ref = jnp.einsum("bilk,iokl->bol", patches, weight) + bias[None, :, :]
    np.testing.assert_allclose(np.asarray(out), np.asarray(ref), rtol=1e-5, atol=1e-5)

    print("KERNEL_OK")
</pallas_src>

<mosaic_0001>
module attributes {stable_mosaic.version = 11 : i64} {
  func.func @_lc1d_kernel(%arg0: i32, %arg1: memref<8x4x16xf32, #tpu.memory_space<vmem>>, %arg2: memref<3x4x128xf32, #tpu.memory_space<vmem>>, %arg3: memref<1x128xf32, #tpu.memory_space<vmem>>, %arg4: memref<8x1x128xf32, #tpu.memory_space<vmem>>, %arg5: memref<8x4x18xf32, #tpu.memory_space<vmem>>) attributes {dimension_semantics = [#tpu.dimension_semantics<parallel>], iteration_bounds = array<i64: 1>, scalar_prefetch = 0 : i64, scratch_operands = 1 : i64, tpu.core_type = #tpu.core_type<tc>, window_params = [{transform_indices = @transform_0, window_bounds = array<i64: 8, 4, 16>}, {pipeline_mode = #tpu.pipeline_mode<synchronous>, transform_indices = @transform_1, window_bounds = array<i64: 3, 4, 128>}, {pipeline_mode = #tpu.pipeline_mode<synchronous>, transform_indices = @transform_2, window_bounds = array<i64: 1, 128>}, {transform_indices = @transform_3, window_bounds = array<i64: 8, 1, 128>}]} {
    %c0 = arith.constant 0 : index
    %c0_0 = arith.constant 0 : index
    %c0_1 = arith.constant 0 : index
    %0 = vector.load %arg1[%c0, %c0_0, %c0_1] : memref<8x4x16xf32, #tpu.memory_space<vmem>>, vector<8x4x16xf32>
    %cst = arith.constant 0.000000e+00 : f32
    %1 = vector.broadcast %cst : f32 to vector<8x4x1xf32>
    %cst_2 = arith.constant 0.000000e+00 : f32
    %2 = vector.broadcast %cst_2 : f32 to vector<8x4x1xf32>
    %3 = tpu.concatenate %1, %0, %2 in 2 : vector<8x4x1xf32>, vector<8x4x16xf32>, vector<8x4x1xf32> -> vector<8x4x18xf32>
    %c0_3 = arith.constant 0 : index
    %c0_4 = arith.constant 0 : index
    %c0_5 = arith.constant 0 : index
    %4 = vector.load %arg5[%c0_3, %c0_4, %c0_5] : memref<8x4x18xf32, #tpu.memory_space<vmem>>, vector<8x4x18xf32>
    tpu.vector_store %arg5[%c0_3, %c0_4, %c0_5], %3 {strides = array<i32>} : memref<8x4x18xf32, #tpu.memory_space<vmem>>, vector<8x4x18xf32>,
    %cst_6 = arith.constant 0.000000e+00 : f32
    %5 = vector.broadcast %cst_6 : f32 to vector<8x128xf32>
    %c0_7 = arith.constant 0 : index
    %c0_8 = arith.constant 0 : index
    %c0_9 = arith.constant 0 : index
    %6 = vector.load %arg5[%c0_7, %c0_8, %c0_9] : memref<8x4x18xf32, #tpu.memory_space<vmem>>, vector<8x4x16xf32>
    %7 = tpu.concatenate %6, %6, %6, %6, %6, %6, %6, %6 in 2 : vector<8x4x16xf32>, vector<8x4x16xf32>, vector<8x4x16xf32>, vector<8x4x16xf32>, vector<8x4x16xf32>, vector<8x4x16xf32>, vector<8x4x16xf32>, vector<8x4x16xf32> -> vector<8x4x128xf32>
    %c0_10 = arith.constant 0 : index
    %c0_11 = arith.constant 0 : index
    %c0_12 = arith.constant 0 : index
    %8 = vector.load %arg2[%c0_10, %c0_11, %c0_12] : memref<3x4x128xf32, #tpu.memory_space<vmem>>, vector<1x4x128xf32>
    %9 = vector.shape_cast %8 : vector<1x4x128xf32> to vector<4x128xf32>
    %10 = vector.shape_cast %9 : vector<4x128xf32> to vector<1x4x128xf32>
    %11 = vector.broadcast %10 : vector<1x4x128xf32> to vector<8x4x128xf32>
    %12 = arith.mulf %7, %11 : vector<8x4x128xf32>
    %cst_13 = arith.constant dense<0.000000e+00> : vector<8x128xf32>
    %13 = vector.multi_reduction <add>, %12, %cst_13 [1] : vector<8x4x128xf32> to vector<8x128xf32>
    %14 = arith.addf %5, %13 : vector<8x128xf32>
    %c0_14 = arith.constant 0 : index
    %c0_15 = arith.constant 0 : index
    %c1 = arith.constant 1 : index
    %15 = vector.load %arg5[%c0_14, %c0_15, %c1] : memref<8x4x18xf32, #tpu.memory_space<vmem>>, vector<8x4x16xf32>
    %16 = tpu.concatenate %15, %15, %15, %15, %15, %15, %15, %15 in 2 : vector<8x4x16xf32>, vector<8x4x16xf32>, vector<8x4x16xf32>, vector<8x4x16xf32>, vector<8x4x16xf32>, vector<8x4x16xf32>, vector<8x4x16xf32>, vector<8x4x16xf32> -> vector<8x4x128xf32>
    %c1_16 = arith.constant 1 : index
    %c0_17 = arith.constant 0 : index
    %c0_18 = arith.constant 0 : index
    %17 = vector.load %arg2[%c1_16, %c0_17, %c0_18] : memref<3x4x128xf32, #tpu.memory_space<vmem>>, vector<1x4x128xf32>
    %18 = vector.shape_cast %17 : vector<1x4x128xf32> to vector<4x128xf32>
    %19 = vector.shape_cast %18 : vector<4x128xf32> to vector<1x4x128xf32>
    %20 = vector.broadcast %19 : vector<1x4x128xf32> to vector<8x4x128xf32>
    %21 = arith.mulf %16, %20 : vector<8x4x128xf32>
    %cst_19 = arith.constant dense<0.000000e+00> : vector<8x128xf32>
    %22 = vector.multi_reduction <add>, %21, %cst_19 [1] : vector<8x4x128xf32> to vector<8x128xf32>
    %23 = arith.addf %14, %22 : vector<8x128xf32>
    %c0_20 = arith.constant 0 : index
    %c0_21 = arith.constant 0 : index
    %c2 = arith.constant 2 : index
    %24 = vector.load %arg5[%c0_20, %c0_21, %c2] : memref<8x4x18xf32, #tpu.memory_space<vmem>>, vector<8x4x16xf32>
    %25 = tpu.concatenate %24, %24, %24, %24, %24, %24, %24, %24 in 2 : vector<8x4x16xf32>, vector<8x4x16xf32>, vector<8x4x16xf32>, vector<8x4x16xf32>, vector<8x4x16xf32>, vector<8x4x16xf32>, vector<8x4x16xf32>, vector<8x4x16xf32> -> vector<8x4x128xf32>
    %c2_22 = arith.constant 2 : index
    %c0_23 = arith.constant 0 : index
    %c0_24 = arith.constant 0 : index
    %26 = vector.load %arg2[%c2_22, %c0_23, %c0_24] : memref<3x4x128xf32, #tpu.memory_space<vmem>>, vector<1x4x128xf32>
    %27 = vector.shape_cast %26 : vector<1x4x128xf32> to vector<4x128xf32>
    %28 = vector.shape_cast %27 : vector<4x128xf32> to vector<1x4x128xf32>
    %29 = vector.broadcast %28 : vector<1x4x128xf32> to vector<8x4x128xf32>
    %30 = arith.mulf %25, %29 : vector<8x4x128xf32>
    %cst_25 = arith.constant dense<0.000000e+00> : vector<8x128xf32>
    %31 = vector.multi_reduction <add>, %30, %cst_25 [1] : vector<8x4x128xf32> to vector<8x128xf32>
    %32 = arith.addf %23, %31 : vector<8x128xf32>
    %c0_26 = arith.constant 0 : index
    %c0_27 = arith.constant 0 : index
    %33 = vector.load %arg3[%c0_26, %c0_27] : memref<1x128xf32, #tpu.memory_space<vmem>>, vector<1x128xf32>
    %34 = vector.broadcast %33 : vector<1x128xf32> to vector<8x128xf32>
    %35 = arith.addf %32, %34 : vector<8x128xf32>
    %c0_28 = arith.constant 0 : index
    %c0_29 = arith.constant 0 : index
    %c0_30 = arith.constant 0 : index
    %36 = vector.load %arg4[%c0_28, %c0_29, %c0_30] : memref<8x1x128xf32, #tpu.memory_space<vmem>>, vector<8x1x128xf32>
    %37 = vector.shape_cast %36 : vector<8x1x128xf32> to vector<8x128xf32>
    %38 = vector.shape_cast %35 : vector<8x128xf32> to vector<8x1x128xf32>
    tpu.vector_store %arg4[%c0_28, %c0_29, %c0_30], %38 {strides = array<i32>} : memref<8x1x128xf32, #tpu.memory_space<vmem>>, vector<8x1x128xf32>,
    return
  }
  func.func @transform_0(%arg0: i32) -> (i32, i32, i32) {
    %c0_i32 = arith.constant 0 : i32
    %c0_i32_0 = arith.constant 0 : i32
    %c0_i32_1 = arith.constant 0 : i32
    return %arg0, %c0_i32, %c0_i32_0 : i32, i32, i32
  }
  func.func @transform_1(%arg0: i32) -> (i32, i32, i32) {
    %c0_i32 = arith.constant 0 : i32
    %c0_i32_0 = arith.constant 0 : i32
    %c0_i32_1 = arith.constant 0 : i32
    %c0_i32_2 = arith.constant 0 : i32
    return %c0_i32, %c0_i32_0, %c0_i32_1 : i32, i32, i32
  }
  func.func @transform_2(%arg0: i32) -> (i32, i32) {
    %c0_i32 = arith.constant 0 : i32
    %c0_i32_0 = arith.constant 0 : i32
    %c0_i32_1 = arith.constant 0 : i32
    return %c0_i32, %c0_i32_0 : i32, i32
  }
  func.func @transform_3(%arg0: i32) -> (i32, i32, i32) {
    %c0_i32 = arith.constant 0 : i32
    %c0_i32_0 = arith.constant 0 : i32
    %c0_i32_1 = arith.constant 0 : i32
    return %arg0, %c0_i32, %c0_i32_0 : i32, i32, i32
  }
}

</mosaic_0001>

<llo_original>
// kernel: tpu_custom_call.1
$region0: #{tpu_custom_call.1}
  #allocation0 [shape = 'u32[]', space=smem, size = 0x4, offset = 0x4, fixed_abs, tag = 'smem constant byte address 0x4 - core index']
  #allocation1 [shape = 'u32[72,128]{1,0:T(1,128)}', space=vmem, size = 0x9000, scoped, tag = 'internal scratch']
  #allocation2 [shape = 'f32[8,4,18]{2,1,0:T(4,128)}', space=vmem, size = 0x4000, scoped, tag = 'scratch operand']
  %s0 = inlined_call_operand.hbm [shape: f32[8,4,16], index: 0, kind: input, shape index: {}]
  %s1 = inlined_call_operand.hbm [shape: f32[3,4,128], index: 1, kind: input, shape index: {}]
  %s2 = inlined_call_operand.vmem [shape: f32[1,128], index: 2, kind: input, shape index: {}]
  %s3 = inlined_call_operand.hbm [shape: f32[8,1,128], index: 3, kind: output, shape index: {}]
  %s4 = sld [smem:[#allocation0]]
  $region30: #{tpu_custom_call.1} parent=0
    _
  %s6 = ssub.s32 1, %s4
  %s7 = scalar_select 0, %s6, %s4
  $region1: #{tpu_custom_call.1} parent=0
    #allocation3 [shape = 'u8[16384]{0}', space=vmem, size = 0x4000, scoped, tag = 'input window, operand 0, single buffered']
    #allocation4 [shape = 's32[1]{0}', space=sflag, size = 0x4, scoped, tag = 'scoped memory for tpu_custom_call.1']
    #allocation5 [shape = 's32[1]{0}', space=sflag, size = 0x4, scoped, tag = 'scoped memory for tpu_custom_call.1']
    #allocation6 [shape = 'u8[6144]{0}', space=vmem, size = 0x1800, scoped, tag = 'input window, operand 1, single buffered']
    #allocation7 [shape = 's32[1]{0}', space=sflag, size = 0x4, scoped, tag = 'scoped memory for tpu_custom_call.1']
    #allocation8 [shape = 'u8[4096]{0}', space=vmem, size = 0x1000, scoped, tag = 'output window, operand 0, single buffered']
    %8 = vsyncpa [#allocation4], 0
    %9 = vsyncpa [#allocation7], 0
    %10 = vsyncpa [#allocation5], 0
    // Predicated region
    $region2: #{tpu_custom_call.1} parent=1 // pred_check
      _
    $region3: #{tpu_custom_call.1} parent=1 // pred_check_branch
      %12 = sbr.rel (0) target = $region5
    $region4: #{tpu_custom_call.1} parent=1 // pred_region
      %14 = vsyncadd [#allocation4], 0
      %s15 = sshll.u32 %s0, 4
      %s16 = int_to_ptr.hbm [resolvable:$true] %s15
      %s17 = sshll.u32 [#allocation3], 4
      %s18 = int_to_ptr.vmem [resolvable:$true] %s17
      %23 = dma.hbm_to_vmem [thread:$0]  %s16, 512, %s18, [#allocation4], 64, 64, 4
    $region5: #{tpu_custom_call.1} parent=1 // pred_fallthru
      _
    // Predicated region
    $region6: #{tpu_custom_call.1} parent=1 // pred_check
      _
    $region7: #{tpu_custom_call.1} parent=1 // pred_check_branch
      %25 = sbr.rel (0) target = $region9
    $region8: #{tpu_custom_call.1} parent=1 // pred_region
      %27 = vsyncadd [#allocation7], 0
      %s28 = sshll.u32 %s1, 4
      %s29 = int_to_ptr.hbm [resolvable:$true] %s28
      %s30 = sshll.u32 [#allocation6], 4
      %s31 = int_to_ptr.vmem [resolvable:$true] %s30
      %36 = dma.hbm_to_vmem [thread:$0]  %s29, 192, %s31, [#allocation7], 64, 64, 4
    $region9: #{tpu_custom_call.1} parent=1 // pred_fallthru
      _
    // Predicated region
    $region10: #{tpu_custom_call.1} parent=1 // pred_check
      _
    $region11: #{tpu_custom_call.1} parent=1 // pred_check_branch
      %38 = sbr.rel (0) target = $region13
    $region12: #{tpu_custom_call.1} parent=1 // pred_region
      _
    $region13: #{tpu_custom_call.1} parent=1 // pred_fallthru
      _
    // Predicated region
    $region14: #{tpu_custom_call.1} parent=1 // pred_check
      _
    $region15: #{tpu_custom_call.1} parent=1 // pred_check_branch
      %40 = sbr.rel (0) target = $region17
    $region16: #{tpu_custom_call.1} parent=1 // pred_region
      %42 = dma.done [#allocation4], 512
    $region17: #{tpu_custom_call.1} parent=1 // pred_fallthru
      _
    // Predicated region
    $region18: #{tpu_custom_call.1} parent=1 // pred_check
      _
    $region19: #{tpu_custom_call.1} parent=1 // pred_check_branch
      %44 = sbr.rel (0) target = $region21
    $region20: #{tpu_custom_call.1} parent=1 // pred_region
      %46 = dma.done [#allocation7], 192
    $region21: #{tpu_custom_call.1} parent=1 // pred_fallthru
      _
    %v47 = vld [vmem:[#allocation3] sm:$0xf]
    %v48 = vld [vmem:[#allocation3 + $0x4] sm:$0xf]
    %v49 = vld [vmem:[#allocation3 + $0x8] sm:$0xf]
    %v50 = vld [vmem:[#allocation3 + $0xc] sm:$0xf]
    %v51 = vld [vmem:[#allocation3 + $0x10] sm:$0xf]
    %v52 = vld [vmem:[#allocation3 + $0x14] sm:$0xf]
    %v53 = vld [vmem:[#allocation3 + $0x18] sm:$0xf]
    %v54 = vld [vmem:[#allocation3 + $0x1c] sm:$0xf]
    %63 = vrot.lane.b32.xlu0 %v47, 1
    %v64 = vpop.permute.xlu0 %63
    %65 = vrot.lane.b32.xlu0 %v48, 1
    %v66 = vpop.permute.xlu0 %65
    %67 = vrot.lane.b32.xlu0 %v49, 1
    %v68 = vpop.permute.xlu0 %67
    %69 = vrot.lane.b32.xlu0 %v50, 1
    %v70 = vpop.permute.xlu0 %69
    %71 = vrot.lane.b32.xlu0 %v51, 1
    %v72 = vpop.permute.xlu0 %71
    %73 = vrot.lane.b32.xlu0 %v52, 1
    %v74 = vpop.permute.xlu0 %73
    %75 = vrot.lane.b32.xlu0 %v53, 1
    %v76 = vpop.permute.xlu0 %75
    %77 = vrot.lane.b32.xlu0 %v54, 1
    %v78 = vpop.permute.xlu0 %77
    %vm87 = vcmask 7168
    %v88 = vsel %vm87, 0.0, %v64
    %v89 = vsel %vm87, 0.0, %v66
    %v90 = vsel %vm87, 0.0, %v68
    %v91 = vsel %vm87, 0.0, %v70
    %v92 = vsel %vm87, 0.0, %v72
    %v93 = vsel %vm87, 0.0, %v74
    %v94 = vsel %vm87, 0.0, %v76
    %v95 = vsel %vm87, 0.0, %v78
    %vm96 = vcmask 138240
    %v97 = vsel %vm96, %v88, 0.0
    %v98 = vsel %vm96, %v89, 0.0
    %v99 = vsel %vm96, %v90, 0.0
    %v100 = vsel %vm96, %v91, 0.0
    %v101 = vsel %vm96, %v92, 0.0
    %v102 = vsel %vm96, %v93, 0.0
    %v103 = vsel %vm96, %v94, 0.0
    %v104 = vsel %vm96, %v95, 0.0
    %vm105 = vcmask 142336
    %106 = vst.msk [vmem:[#allocation2] sm:$0xf] %vm105, %v97
    %107 = vst.msk [vmem:[#allocation2 + $0x4] sm:$0xf] %vm105, %v98
    %108 = vst.msk [vmem:[#allocation2 + $0x8] sm:$0xf] %vm105, %v99
    %109 = vst.msk [vmem:[#allocation2 + $0xc] sm:$0xf] %vm105, %v100
    %110 = vst.msk [vmem:[#allocation2 + $0x10] sm:$0xf] %vm105, %v101
    %111 = vst.msk [vmem:[#allocation2 + $0x14] sm:$0xf] %vm105, %v102
    %112 = vst.msk [vmem:[#allocation2 + $0x18] sm:$0xf] %vm105, %v103
    %113 = vst.msk [vmem:[#allocation2 + $0x1c] sm:$0xf] %vm105, %v104
    %v114 = vld [vmem:[#allocation2] sm:$0xf]
    %v115 = vld [vmem:[#allocation2 + $0x4] sm:$0xf]
    %v116 = vld [vmem:[#allocation2 + $0x8] sm:$0xf]
    %v117 = vld [vmem:[#allocation2 + $0xc] sm:$0xf]
    %v118 = vld [vmem:[#allocation2 + $0x10] sm:$0xf]
    %v119 = vld [vmem:[#allocation2 + $0x14] sm:$0xf]
    %v120 = vld [vmem:[#allocation2 + $0x18] sm:$0xf]
    %v121 = vld [vmem:[#allocation2 + $0x1c] sm:$0xf]
    %130 = vrot.lane.b32.xlu0 %v114, 16
    %v131 = vpop.permute.xlu0 %130
    %132 = vrot.lane.b32.xlu0 %v115, 16
    %v133 = vpop.permute.xlu0 %132
    %134 = vrot.lane.b32.xlu0 %v116, 16
    %v135 = vpop.permute.xlu0 %134
    %136 = vrot.lane.b32.xlu0 %v117, 16
    %v137 = vpop.permute.xlu0 %136
    %138 = vrot.lane.b32.xlu0 %v118, 16
    %v139 = vpop.permute.xlu0 %138
    %140 = vrot.lane.b32.xlu0 %v119, 16
    %v141 = vpop.permute.xlu0 %140
    %142 = vrot.lane.b32.xlu0 %v120, 16
    %v143 = vpop.permute.xlu0 %142
    %144 = vrot.lane.b32.xlu0 %v121, 16
    %v145 = vpop.permute.xlu0 %144
    %154 = vrot.lane.b32.xlu0 %v114, 32
    %v155 = vpop.permute.xlu0 %154
    %156 = vrot.lane.b32.xlu0 %v115, 32
    %v157 = vpop.permute.xlu0 %156
    %158 = vrot.lane.b32.xlu0 %v116, 32
    %v159 = vpop.permute.xlu0 %158
    %160 = vrot.lane.b32.xlu0 %v117, 32
    %v161 = vpop.permute.xlu0 %160
    %162 = vrot.lane.b32.xlu0 %v118, 32
    %v163 = vpop.permute.xlu0 %162
    %164 = vrot.lane.b32.xlu0 %v119, 32
    %v165 = vpop.permute.xlu0 %164
    %166 = vrot.lane.b32.xlu0 %v120, 32
    %v167 = vpop.permute.xlu0 %166
    %168 = vrot.lane.b32.xlu0 %v121, 32
    %v169 = vpop.permute.xlu0 %168
    %178 = vrot.lane.b32.xlu0 %v114, 48
    %v179 = vpop.permute.xlu0 %178
    %180 = vrot.lane.b32.xlu0 %v115, 48
    %v181 = vpop.permute.xlu0 %180
    %182 = vrot.lane.b32.xlu0 %v116, 48
    %v183 = vpop.permute.xlu0 %182
    %184 = vrot.lane.b32.xlu0 %v117, 48
    %v185 = vpop.permute.xlu0 %184
    %186 = vrot.lane.b32.xlu0 %v118, 48
    %v187 = vpop.permute.xlu0 %186
    %188 = vrot.lane.b32.xlu0 %v119, 48
    %v189 = vpop.permute.xlu0 %188
    %190 = vrot.lane.b32.xlu0 %v120, 48
    %v191 = vpop.permute.xlu0 %190
    %192 = vrot.lane.b32.xlu0 %v121, 48
    %v193 = vpop.permute.xlu0 %192
    %202 = vrot.lane.b32.xlu0 %v114, 64
    %v203 = vpop.permute.xlu0 %202
    %204 = vrot.lane.b32.xlu0 %v115, 64
    %v205 = vpop.permute.xlu0 %204
    %206 = vrot.lane.b32.xlu0 %v116, 64
    %v207 = vpop.permute.xlu0 %206
    %208 = vrot.lane.b32.xlu0 %v117, 64
    %v209 = vpop.permute.xlu0 %208
    %210 = vrot.lane.b32.xlu0 %v118, 64
    %v211 = vpop.permute.xlu0 %210
    %212 = vrot.lane.b32.xlu0 %v119, 64
    %v213 = vpop.permute.xlu0 %212
    %214 = vrot.lane.b32.xlu0 %v120, 64
    %v215 = vpop.permute.xlu0 %214
    %216 = vrot.lane.b32.xlu0 %v121, 64
    %v217 = vpop.permute.xlu0 %216
    %226 = vrot.lane.b32.xlu0 %v114, 80
    %v227 = vpop.permute.xlu0 %226
    %228 = vrot.lane.b32.xlu0 %v115, 80
    %v229 = vpop.permute.xlu0 %228
    %230 = vrot.lane.b32.xlu0 %v116, 80
    %v231 = vpop.permute.xlu0 %230
    %232 = vrot.lane.b32.xlu0 %v117, 80
    %v233 = vpop.permute.xlu0 %232
    %234 = vrot.lane.b32.xlu0 %v118, 80
    %v235 = vpop.permute.xlu0 %234
    %236 = vrot.lane.b32.xlu0 %v119, 80
    %v237 = vpop.permute.xlu0 %236
    %238 = vrot.lane.b32.xlu0 %v120, 80
    %v239 = vpop.permute.xlu0 %238
    %240 = vrot.lane.b32.xlu0 %v121, 80
    %v241 = vpop.permute.xlu0 %240
    %250 = vrot.lane.b32.xlu0 %v114, 96
    %v251 = vpop.permute.xlu0 %250
    %252 = vrot.lane.b32.xlu0 %v115, 96
    %v253 = vpop.permute.xlu0 %252
    %254 = vrot.lane.b32.xlu0 %v116, 96
    %v255 = vpop.permute.xlu0 %254
    %256 = vrot.lane.b32.xlu0 %v117, 96
    %v257 = vpop.permute.xlu0 %256
    %258 = vrot.lane.b32.xlu0 %v118, 96
    %v259 = vpop.permute.xlu0 %258
    %260 = vrot.lane.b32.xlu0 %v119, 96
    %v261 = vpop.permute.xlu0 %260
    %262 = vrot.lane.b32.xlu0 %v120, 96
    %v263 = vpop.permute.xlu0 %262
    %264 = vrot.lane.b32.xlu0 %v121, 96
    %v265 = vpop.permute.xlu0 %264
    %274 = vrot.lane.b32.xlu0 %v114, 112
    %v275 = vpop.permute.xlu0 %274
    %276 = vrot.lane.b32.xlu0 %v115, 112
    %v277 = vpop.permute.xlu0 %276
    %278 = vrot.lane.b32.xlu0 %v116, 112
    %v279 = vpop.permute.xlu0 %278
    %280 = vrot.lane.b32.xlu0 %v117, 112
    %v281 = vpop.permute.xlu0 %280
    %282 = vrot.lane.b32.xlu0 %v118, 112
    %v283 = vpop.permute.xlu0 %282
    %284 = vrot.lane.b32.xlu0 %v119, 112
    %v285 = vpop.permute.xlu0 %284
    %286 = vrot.lane.b32.xlu0 %v120, 112
    %v287 = vpop.permute.xlu0 %286
    %288 = vrot.lane.b32.xlu0 %v121, 112
    %v289 = vpop.permute.xlu0 %288
    %vm298 = vcmask 130048
    %v299 = vsel %vm298, %v114, %v131
    %v300 = vsel %vm298, %v115, %v133
    %v301 = vsel %vm298, %v116, %v135
    %v302 = vsel %vm298, %v117, %v137
    %v303 = vsel %vm298, %v118, %v139
    %v304 = vsel %vm298, %v119, %v141
    %v305 = vsel %vm298, %v120, %v143
    %v306 = vsel %vm298, %v121, %v145
    %vm307 = vcmask 261120
    %v308 = vsel %vm307, %v299, %v155
    %v309 = vsel %vm307, %v300, %v157
    %v310 = vsel %vm307, %v301, %v159
    %v311 = vsel %vm307, %v302, %v161
    %v312 = vsel %vm307, %v303, %v163
    %v313 = vsel %vm307, %v304, %v165
    %v314 = vsel %vm307, %v305, %v167
    %v315 = vsel %vm307, %v306, %v169
    %vm316 = vcmask 392192
    %v317 = vsel %vm316, %v308, %v179
    %v318 = vsel %vm316, %v309, %v181
    %v319 = vsel %vm316, %v310, %v183
    %v320 = vsel %vm316, %v311, %v185
    %v321 = vsel %vm316, %v312, %v187
    %v322 = vsel %vm316, %v313, %v189
    %v323 = vsel %vm316, %v314, %v191
    %v324 = vsel %vm316, %v315, %v193
    %vm325 = vcmask 523264
    %v326 = vsel %vm325, %v317, %v203
    %v327 = vsel %vm325, %v318, %v205
    %v328 = vsel %vm325, %v319, %v207
    %v329 = vsel %vm325, %v320, %v209
    %v330 = vsel %vm325, %v321, %v211
    %v331 = vsel %vm325, %v322, %v213
    %v332 = vsel %vm325, %v323, %v215
    %v333 = vsel %vm325, %v324, %v217
    %vm334 = vcmask 654336
    %v335 = vsel %vm334, %v326, %v227
    %v336 = vsel %vm334, %v327, %v229
    %v337 = vsel %vm334, %v328, %v231
    %v338 = vsel %vm334, %v329, %v233
    %v339 = vsel %vm334, %v330, %v235
    %v340 = vsel %vm334, %v331, %v237
    %v341 = vsel %vm334, %v332, %v239
    %v342 = vsel %vm334, %v333, %v241
    %vm343 = vcmask 785408
    %v344 = vsel %vm343, %v335, %v251
    %v345 = vsel %vm343, %v336, %v253
    %v346 = vsel %vm343, %v337, %v255
    %v347 = vsel %vm343, %v338, %v257
    %v348 = vsel %vm343, %v339, %v259
    %v349 = vsel %vm343, %v340, %v261
    %v350 = vsel %vm343, %v341, %v263
    %v351 = vsel %vm343, %v342, %v265
    %vm352 = vcmask 916480
    %v353 = vsel %vm352, %v344, %v275
    %v354 = vsel %vm352, %v345, %v277
    %v355 = vsel %vm352, %v346, %v279
    %v356 = vsel %vm352, %v347, %v281
    %v357 = vsel %vm352, %v348, %v283
    %v358 = vsel %vm352, %v349, %v285
    %v359 = vsel %vm352, %v350, %v287
    %v360 = vsel %vm352, %v351, %v289
    %v361 = vld [vmem:[#allocation6] sm:$0xf]
    %v362 = vmul.f32 %v353, %v361
    %v363 = vmul.f32 %v354, %v361
    %v364 = vmul.f32 %v355, %v361
    %v365 = vmul.f32 %v356, %v361
    %v366 = vmul.f32 %v357, %v361
    %v367 = vmul.f32 %v358, %v361
    %v368 = vmul.f32 %v359, %v361
    %v369 = vmul.f32 %v360, %v361
    %vm370 = vcmask 1043456
    %v371 = vsel %vm370, %v362, 0.0
    %v372 = vrot.slane %v371, 4
    %v373 = vadd.f32 %v371, %v372
    %v374 = vrot.slane %v373, 2
    %v375 = vadd.f32 %v373, %v374
    %v376 = vrot.slane %v375, 1
    %v377 = vadd.f32 %v375, %v376
    %v378 = vsel %vm370, %v363, 0.0
    %v379 = vrot.slane %v378, 4
    %v380 = vadd.f32 %v378, %v379
    %v381 = vrot.slane %v380, 2
    %v382 = vadd.f32 %v380, %v381
    %v383 = vrot.slane %v382, 1
    %v384 = vadd.f32 %v382, %v383
    %v385 = vsel %vm370, %v364, 0.0
    %v386 = vrot.slane %v385, 4
    %v387 = vadd.f32 %v385, %v386
    %v388 = vrot.slane %v387, 2
    %v389 = vadd.f32 %v387, %v388
    %v390 = vrot.slane %v389, 1
    %v391 = vadd.f32 %v389, %v390
    %v392 = vsel %vm370, %v365, 0.0
    %v393 = vrot.slane %v392, 4
    %v394 = vadd.f32 %v392, %v393
    %v395 = vrot.slane %v394, 2
    %v396 = vadd.f32 %v394, %v395
    %v397 = vrot.slane %v396, 1
    %v398 = vadd.f32 %v396, %v397
    %v399 = vsel %vm370, %v366, 0.0
    %v400 = vrot.slane %v399, 4
    %v401 = vadd.f32 %v399, %v400
    %v402 = vrot.slane %v401, 2
    %v403 = vadd.f32 %v401, %v402
    %v404 = vrot.slane %v403, 1
    %v405 = vadd.f32 %v403, %v404
    %v406 = vsel %vm370, %v367, 0.0
    %v407 = vrot.slane %v406, 4
    %v408 = vadd.f32 %v406, %v407
    %v409 = vrot.slane %v408, 2
    %v410 = vadd.f32 %v408, %v409
    %v411 = vrot.slane %v410, 1
    %v412 = vadd.f32 %v410, %v411
    %v413 = vsel %vm370, %v368, 0.0
    %v414 = vrot.slane %v413, 4
    %v415 = vadd.f32 %v413, %v414
    %v416 = vrot.slane %v415, 2
    %v417 = vadd.f32 %v415, %v416
    %v418 = vrot.slane %v417, 1
    %v419 = vadd.f32 %v417, %v418
    %v420 = vsel %vm370, %v369, 0.0
    %v421 = vrot.slane %v420, 4
    %v422 = vadd.f32 %v420, %v421
    %v423 = vrot.slane %v422, 2
    %v424 = vadd.f32 %v422, %v423
    %v425 = vrot.slane %v424, 1
    %v426 = vadd.f32 %v424, %v425
    %v427 = vadd.f32 %v377, 0.0
    %v428 = vadd.f32 %v384, 0.0
    %v429 = vadd.f32 %v391, 0.0
    %v430 = vadd.f32 %v398, 0.0
    %v431 = vadd.f32 %v405, 0.0
    %v432 = vadd.f32 %v412, 0.0
    %v433 = vadd.f32 %v419, 0.0
    %v434 = vadd.f32 %v426, 0.0
    %435 = vrot.lane.b32.xlu0 %v114, 127
    %v436 = vpop.permute.xlu0 %435
    %437 = vrot.lane.b32.xlu0 %v115, 127
    %v438 = vpop.permute.xlu0 %437
    %439 = vrot.lane.b32.xlu0 %v116, 127
    %v440 = vpop.permute.xlu0 %439
    %441 = vrot.lane.b32.xlu0 %v117, 127
    %v442 = vpop.permute.xlu0 %441
    %443 = vrot.lane.b32.xlu0 %v118, 127
    %v444 = vpop.permute.xlu0 %443
    %445 = vrot.lane.b32.xlu0 %v119, 127
    %v446 = vpop.permute.xlu0 %445
    %447 = vrot.lane.b32.xlu0 %v120, 127
    %v448 = vpop.permute.xlu0 %447
    %449 = vrot.lane.b32.xlu0 %v121, 127
    %v450 = vpop.permute.xlu0 %449
    %459 = vrot.lane.b32.xlu0 %v114, 15
    %v460 = vpop.permute.xlu0 %459
    %461 = vrot.lane.b32.xlu0 %v115, 15
    %v462 = vpop.permute.xlu0 %461
    %463 = vrot.lane.b32.xlu0 %v116, 15
    %v464 = vpop.permute.xlu0 %463
    %465 = vrot.lane.b32.xlu0 %v117, 15
    %v466 = vpop.permute.xlu0 %465
    %467 = vrot.lane.b32.xlu0 %v118, 15
    %v468 = vpop.permute.xlu0 %467
    %469 = vrot.lane.b32.xlu0 %v119, 15
    %v470 = vpop.permute.xlu0 %469
    %471 = vrot.lane.b32.xlu0 %v120, 15
    %v472 = vpop.permute.xlu0 %471
    %473 = vrot.lane.b32.xlu0 %v121, 15
    %v474 = vpop.permute.xlu0 %473
    %483 = vrot.lane.b32.xlu0 %v114, 31
    %v484 = vpop.permute.xlu0 %483
    %485 = vrot.lane.b32.xlu0 %v115, 31
    %v486 = vpop.permute.xlu0 %485
    %487 = vrot.lane.b32.xlu0 %v116, 31
    %v488 = vpop.permute.xlu0 %487
    %489 = vrot.lane.b32.xlu0 %v117, 31
    %v490 = vpop.permute.xlu0 %489
    %491 = vrot.lane.b32.xlu0 %v118, 31
    %v492 = vpop.permute.xlu0 %491
    %493 = vrot.lane.b32.xlu0 %v119, 31
    %v494 = vpop.permute.xlu0 %493
    %495 = vrot.lane.b32.xlu0 %v120, 31
    %v496 = vpop.permute.xlu0 %495
    %497 = vrot.lane.b32.xlu0 %v121, 31
    %v498 = vpop.permute.xlu0 %497
    %507 = vrot.lane.b32.xlu0 %v114, 47
    %v508 = vpop.permute.xlu0 %507
    %509 = vrot.lane.b32.xlu0 %v115, 47
    %v510 = vpop.permute.xlu0 %509
    %511 = vrot.lane.b32.xlu0 %v116, 47
    %v512 = vpop.permute.xlu0 %511
    %513 = vrot.lane.b32.xlu0 %v117, 47
    %v514 = vpop.permute.xlu0 %513
    %515 = vrot.lane.b32.xlu0 %v118, 47
    %v516 = vpop.permute.xlu0 %515
    %517 = vrot.lane.b32.xlu0 %v119, 47
    %v518 = vpop.permute.xlu0 %517
    %519 = vrot.lane.b32.xlu0 %v120, 47
    %v520 = vpop.permute.xlu0 %519
    %521 = vrot.lane.b32.xlu0 %v121, 47
    %v522 = vpop.permute.xlu0 %521
    %531 = vrot.lane.b32.xlu0 %v114, 63
    %v532 = vpop.permute.xlu0 %531
    %533 = vrot.lane.b32.xlu0 %v115, 63
    %v534 = vpop.permute.xlu0 %533
    %535 = vrot.lane.b32.xlu0 %v116, 63
    %v536 = vpop.permute.xlu0 %535
    %537 = vrot.lane.b32.xlu0 %v117, 63
    %v538 = vpop.permute.xlu0 %537
    %539 = vrot.lane.b32.xlu0 %v118, 63
    %v540 = vpop.permute.xlu0 %539
    %541 = vrot.lane.b32.xlu0 %v119, 63
    %v542 = vpop.permute.xlu0 %541
    %543 = vrot.lane.b32.xlu0 %v120, 63
    %v544 = vpop.permute.xlu0 %543
    %545 = vrot.lane.b32.xlu0 %v121, 63
    %v546 = vpop.permute.xlu0 %545
    %555 = vrot.lane.b32.xlu0 %v114, 79
    %v556 = vpop.permute.xlu0 %555
    %557 = vrot.lane.b32.xlu0 %v115, 79
    %v558 = vpop.permute.xlu0 %557
    %559 = vrot.lane.b32.xlu0 %v116, 79
    %v560 = vpop.permute.xlu0 %559
    %561 = vrot.lane.b32.xlu0 %v117, 79
    %v562 = vpop.permute.xlu0 %561
    %563 = vrot.lane.b32.xlu0 %v118, 79
    %v564 = vpop.permute.xlu0 %563
    %565 = vrot.lane.b32.xlu0 %v119, 79
    %v566 = vpop.permute.xlu0 %565
    %567 = vrot.lane.b32.xlu0 %v120, 79
    %v568 = vpop.permute.xlu0 %567
    %569 = vrot.lane.b32.xlu0 %v121, 79
    %v570 = vpop.permute.xlu0 %569
    %579 = vrot.lane.b32.xlu0 %v114, 95
    %v580 = vpop.permute.xlu0 %579
    %581 = vrot.lane.b32.xlu0 %v115, 95
    %v582 = vpop.permute.xlu0 %581
    %583 = vrot.lane.b32.xlu0 %v116, 95
    %v584 = vpop.permute.xlu0 %583
    %585 = vrot.lane.b32.xlu0 %v117, 95
    %v586 = vpop.permute.xlu0 %585
    %587 = vrot.lane.b32.xlu0 %v118, 95
    %v588 = vpop.permute.xlu0 %587
    %589 = vrot.lane.b32.xlu0 %v119, 95
    %v590 = vpop.permute.xlu0 %589
    %591 = vrot.lane.b32.xlu0 %v120, 95
    %v592 = vpop.permute.xlu0 %591
    %593 = vrot.lane.b32.xlu0 %v121, 95
    %v594 = vpop.permute.xlu0 %593
    %603 = vrot.lane.b32.xlu0 %v114, 111
    %v604 = vpop.permute.xlu0 %603
    %605 = vrot.lane.b32.xlu0 %v115, 111
    %v606 = vpop.permute.xlu0 %605
    %607 = vrot.lane.b32.xlu0 %v116, 111
    %v608 = vpop.permute.xlu0 %607
    %609 = vrot.lane.b32.xlu0 %v117, 111
    %v610 = vpop.permute.xlu0 %609
    %611 = vrot.lane.b32.xlu0 %v118, 111
    %v612 = vpop.permute.xlu0 %611
    %613 = vrot.lane.b32.xlu0 %v119, 111
    %v614 = vpop.permute.xlu0 %613
    %615 = vrot.lane.b32.xlu0 %v120, 111
    %v616 = vpop.permute.xlu0 %615
    %617 = vrot.lane.b32.xlu0 %v121, 111
    %v618 = vpop.permute.xlu0 %617
    %v627 = vsel %vm298, %v436, %v460
    %v628 = vsel %vm298, %v438, %v462
    %v629 = vsel %vm298, %v440, %v464
    %v630 = vsel %vm298, %v442, %v466
    %v631 = vsel %vm298, %v444, %v468
    %v632 = vsel %vm298, %v446, %v470
    %v633 = vsel %vm298, %v448, %v472
    %v634 = vsel %vm298, %v450, %v474
    %v635 = vsel %vm307, %v627, %v484
    %v636 = vsel %vm307, %v628, %v486
    %v637 = vsel %vm307, %v629, %v488
    %v638 = vsel %vm307, %v630, %v490
    %v639 = vsel %vm307, %v631, %v492
    %v640 = vsel %vm307, %v632, %v494
    %v641 = vsel %vm307, %v633, %v496
    %v642 = vsel %vm307, %v634, %v498
    %v643 = vsel %vm316, %v635, %v508
    %v644 = vsel %vm316, %v636, %v510
    %v645 = vsel %vm316, %v637, %v512
    %v646 = vsel %vm316, %v638, %v514
    %v647 = vsel %vm316, %v639, %v516
    %v648 = vsel %vm316, %v640, %v518
    %v649 = vsel %vm316, %v641, %v520
    %v650 = vsel %vm316, %v642, %v522
    %v651 = vsel %vm325, %v643, %v532
    %v652 = vsel %vm325, %v644, %v534
    %v653 = vsel %vm325, %v645, %v536
    %v654 = vsel %vm325, %v646, %v538
    %v655 = vsel %vm325, %v647, %v540
    %v656 = vsel %vm325, %v648, %v542
    %v657 = vsel %vm325, %v649, %v544
    %v658 = vsel %vm325, %v650, %v546
    %v659 = vsel %vm334, %v651, %v556
    %v660 = vsel %vm334, %v652, %v558
    %v661 = vsel %vm334, %v653, %v560
    %v662 = vsel %vm334, %v654, %v562
    %v663 = vsel %vm334, %v655, %v564
    %v664 = vsel %vm334, %v656, %v566
    %v665 = vsel %vm334, %v657, %v568
    %v666 = vsel %vm334, %v658, %v570
    %v667 = vsel %vm343, %v659, %v580
    %v668 = vsel %vm343, %v660, %v582
    %v669 = vsel %vm343, %v661, %v584
    %v670 = vsel %vm343, %v662, %v586
    %v671 = vsel %vm343, %v663, %v588
    %v672 = vsel %vm343, %v664, %v590
    %v673 = vsel %vm343, %v665, %v592
    %v674 = vsel %vm343, %v666, %v594
    %v675 = vsel %vm352, %v667, %v604
    %v676 = vsel %vm352, %v668, %v606
    %v677 = vsel %vm352, %v669, %v608
    %v678 = vsel %vm352, %v670, %v610
    %v679 = vsel %vm352, %v671, %v612
    %v680 = vsel %vm352, %v672, %v614
    %v681 = vsel %vm352, %v673, %v616
    %v682 = vsel %vm352, %v674, %v618
    %s683 = scalar_lea.vmem [#allocation6], 4
    %v684 = vld [vmem:[%s683] sm:$0xf]
    %v685 = vmul.f32 %v675, %v684
    %v686 = vmul.f32 %v676, %v684
    %v687 = vmul.f32 %v677, %v684
    %v688 = vmul.f32 %v678, %v684
    %v689 = vmul.f32 %v679, %v684
    %v690 = vmul.f32 %v680, %v684
    %v691 = vmul.f32 %v681, %v684
    %v692 = vmul.f32 %v682, %v684
    %v693 = vsel %vm370, %v685, 0.0
    %v694 = vrot.slane %v693, 4
    %v695 = vadd.f32 %v693, %v694
    %v696 = vrot.slane %v695, 2
    %v697 = vadd.f32 %v695, %v696
    %v698 = vrot.slane %v697, 1
    %v699 = vadd.f32 %v697, %v698
    %v700 = vsel %vm370, %v686, 0.0
    %v701 = vrot.slane %v700, 4
    %v702 = vadd.f32 %v700, %v701
    %v703 = vrot.slane %v702, 2
    %v704 = vadd.f32 %v702, %v703
    %v705 = vrot.slane %v704, 1
    %v706 = vadd.f32 %v704, %v705
    %v707 = vsel %vm370, %v687, 0.0
    %v708 = vrot.slane %v707, 4
    %v709 = vadd.f32 %v707, %v708
    %v710 = vrot.slane %v709, 2
    %v711 = vadd.f32 %v709, %v710
    %v712 = vrot.slane %v711, 1
    %v713 = vadd.f32 %v711, %v712
    %v714 = vsel %vm370, %v688, 0.0
    %v715 = vrot.slane %v714, 4
    %v716 = vadd.f32 %v714, %v715
    %v717 = vrot.slane %v716, 2
    %v718 = vadd.f32 %v716, %v717
    %v719 = vrot.slane %v718, 1
    %v720 = vadd.f32 %v718, %v719
    %v721 = vsel %vm370, %v689, 0.0
    %v722 = vrot.slane %v721, 4
    %v723 = vadd.f32 %v721, %v722
    %v724 = vrot.slane %v723, 2
    %v725 = vadd.f32 %v723, %v724
    %v726 = vrot.slane %v725, 1
    %v727 = vadd.f32 %v725, %v726
    %v728 = vsel %vm370, %v690, 0.0
    %v729 = vrot.slane %v728, 4
    %v730 = vadd.f32 %v728, %v729
    %v731 = vrot.slane %v730, 2
    %v732 = vadd.f32 %v730, %v731
    %v733 = vrot.slane %v732, 1
    %v734 = vadd.f32 %v732, %v733
    %v735 = vsel %vm370, %v691, 0.0
    %v736 = vrot.slane %v735, 4
    %v737 = vadd.f32 %v735, %v736
    %v738 = vrot.slane %v737, 2
    %v739 = vadd.f32 %v737, %v738
    %v740 = vrot.slane %v739, 1
    %v741 = vadd.f32 %v739, %v740
    %v742 = vsel %vm370, %v692, 0.0
    %v743 = vrot.slane %v742, 4
    %v744 = vadd.f32 %v742, %v743
    %v745 = vrot.slane %v744, 2
    %v746 = vadd.f32 %v744, %v745
    %v747 = vrot.slane %v746, 1
    %v748 = vadd.f32 %v746, %v747
    %v749 = vadd.f32 %v427, %v699
    %v750 = vadd.f32 %v428, %v706
    %v751 = vadd.f32 %v429, %v713
    %v752 = vadd.f32 %v430, %v720
    %v753 = vadd.f32 %v431, %v727
    %v754 = vadd.f32 %v432, %v734
    %v755 = vadd.f32 %v433, %v741
    %v756 = vadd.f32 %v434, %v748
    %757 = vrot.lane.b32.xlu0 %v114, 126
    %v758 = vpop.permute.xlu0 %757
    %759 = vrot.lane.b32.xlu0 %v115, 126
    %v760 = vpop.permute.xlu0 %759
    %761 = vrot.lane.b32.xlu0 %v116, 126
    %v762 = vpop.permute.xlu0 %761
    %763 = vrot.lane.b32.xlu0 %v117, 126
    %v764 = vpop.permute.xlu0 %763
    %765 = vrot.lane.b32.xlu0 %v118, 126
    %v766 = vpop.permute.xlu0 %765
    %767 = vrot.lane.b32.xlu0 %v119, 126
    %v768 = vpop.permute.xlu0 %767
    %769 = vrot.lane.b32.xlu0 %v120, 126
    %v770 = vpop.permute.xlu0 %769
    %771 = vrot.lane.b32.xlu0 %v121, 126
    %v772 = vpop.permute.xlu0 %771
    %781 = vrot.lane.b32.xlu0 %v114, 14
    %v782 = vpop.permute.xlu0 %781
    %783 = vrot.lane.b32.xlu0 %v115, 14
    %v784 = vpop.permute.xlu0 %783
    %785 = vrot.lane.b32.xlu0 %v116, 14
    %v786 = vpop.permute.xlu0 %785
    %787 = vrot.lane.b32.xlu0 %v117, 14
    %v788 = vpop.permute.xlu0 %787
    %789 = vrot.lane.b32.xlu0 %v118, 14
    %v790 = vpop.permute.xlu0 %789
    %791 = vrot.lane.b32.xlu0 %v119, 14
    %v792 = vpop.permute.xlu0 %791
    %793 = vrot.lane.b32.xlu0 %v120, 14
    %v794 = vpop.permute.xlu0 %793
    %795 = vrot.lane.b32.xlu0 %v121, 14
    %v796 = vpop.permute.xlu0 %795
    %805 = vrot.lane.b32.xlu0 %v114, 30
    %v806 = vpop.permute.xlu0 %805
    %807 = vrot.lane.b32.xlu0 %v115, 30
    %v808 = vpop.permute.xlu0 %807
    %809 = vrot.lane.b32.xlu0 %v116, 30
    %v810 = vpop.permute.xlu0 %809
    %811 = vrot.lane.b32.xlu0 %v117, 30
    %v812 = vpop.permute.xlu0 %811
    %813 = vrot.lane.b32.xlu0 %v118, 30
    %v814 = vpop.permute.xlu0 %813
    %815 = vrot.lane.b32.xlu0 %v119, 30
    %v816 = vpop.permute.xlu0 %815
    %817 = vrot.lane.b32.xlu0 %v120, 30
    %v818 = vpop.permute.xlu0 %817
    %819 = vrot.lane.b32.xlu0 %v121, 30
    %v820 = vpop.permute.xlu0 %819
    %829 = vrot.lane.b32.xlu0 %v114, 46
    %v830 = vpop.permute.xlu0 %829
    %831 = vrot.lane.b32.xlu0 %v115, 46
    %v832 = vpop.permute.xlu0 %831
    %833 = vrot.lane.b32.xlu0 %v116, 46
    %v834 = vpop.permute.xlu0 %833
    %835 = vrot.lane.b32.xlu0 %v117, 46
    %v836 = vpop.permute.xlu0 %835
    %837 = vrot.lane.b32.xlu0 %v118, 46
    %v838 = vpop.permute.xlu0 %837
    %839 = vrot.lane.b32.xlu0 %v119, 46
    %v840 = vpop.permute.xlu0 %839
    %841 = vrot.lane.b32.xlu0 %v120, 46
    %v842 = vpop.permute.xlu0 %841
    %843 = vrot.lane.b32.xlu0 %v121, 46
    %v844 = vpop.permute.xlu0 %843
    %853 = vrot.lane.b32.xlu0 %v114, 62
    %v854 = vpop.permute.xlu0 %853
    %855 = vrot.lane.b32.xlu0 %v115, 62
    %v856 = vpop.permute.xlu0 %855
    %857 = vrot.lane.b32.xlu0 %v116, 62
    %v858 = vpop.permute.xlu0 %857
    %859 = vrot.lane.b32.xlu0 %v117, 62
    %v860 = vpop.permute.xlu0 %859
    %861 = vrot.lane.b32.xlu0 %v118, 62
    %v862 = vpop.permute.xlu0 %861
    %863 = vrot.lane.b32.xlu0 %v119, 62
    %v864 = vpop.permute.xlu0 %863
    %865 = vrot.lane.b32.xlu0 %v120, 62
    %v866 = vpop.permute.xlu0 %865
    %867 = vrot.lane.b32.xlu0 %v121, 62
    %v868 = vpop.permute.xlu0 %867
    %877 = vrot.lane.b32.xlu0 %v114, 78
    %v878 = vpop.permute.xlu0 %877
    %879 = vrot.lane.b32.xlu0 %v115, 78
    %v880 = vpop.permute.xlu0 %879
    %881 = vrot.lane.b32.xlu0 %v116, 78
    %v882 = vpop.permute.xlu0 %881
    %883 = vrot.lane.b32.xlu0 %v117, 78
    %v884 = vpop.permute.xlu0 %883
    %885 = vrot.lane.b32.xlu0 %v118, 78
    %v886 = vpop.permute.xlu0 %885
    %887 = vrot.lane.b32.xlu0 %v119, 78
    %v888 = vpop.permute.xlu0 %887
    %889 = vrot.lane.b32.xlu0 %v120, 78
    %v890 = vpop.permute.xlu0 %889
    %891 = vrot.lane.b32.xlu0 %v121, 78
    %v892 = vpop.permute.xlu0 %891
    %901 = vrot.lane.b32.xlu0 %v114, 94
    %v902 = vpop.permute.xlu0 %901
    %903 = vrot.lane.b32.xlu0 %v115, 94
    %v904 = vpop.permute.xlu0 %903
    %905 = vrot.lane.b32.xlu0 %v116, 94
    %v906 = vpop.permute.xlu0 %905
    %907 = vrot.lane.b32.xlu0 %v117, 94
    %v908 = vpop.permute.xlu0 %907
    %909 = vrot.lane.b32.xlu0 %v118, 94
    %v910 = vpop.permute.xlu0 %909
    %911 = vrot.lane.b32.xlu0 %v119, 94
    %v912 = vpop.permute.xlu0 %911
    %913 = vrot.lane.b32.xlu0 %v120, 94
    %v914 = vpop.permute.xlu0 %913
    %915 = vrot.lane.b32.xlu0 %v121, 94
    %v916 = vpop.permute.xlu0 %915
    %925 = vrot.lane.b32.xlu0 %v114, 110
    %v926 = vpop.permute.xlu0 %925
    %927 = vrot.lane.b32.xlu0 %v115, 110
    %v928 = vpop.permute.xlu0 %927
    %929 = vrot.lane.b32.xlu0 %v116, 110
    %v930 = vpop.permute.xlu0 %929
    %931 = vrot.lane.b32.xlu0 %v117, 110
    %v932 = vpop.permute.xlu0 %931
    %933 = vrot.lane.b32.xlu0 %v118, 110
    %v934 = vpop.permute.xlu0 %933
    %935 = vrot.lane.b32.xlu0 %v119, 110
    %v936 = vpop.permute.xlu0 %935
    %937 = vrot.lane.b32.xlu0 %v120, 110
    %v938 = vpop.permute.xlu0 %937
    %939 = vrot.lane.b32.xlu0 %v121, 110
    %v940 = vpop.permute.xlu0 %939
    %v949 = vsel %vm298, %v758, %v782
    %v950 = vsel %vm298, %v760, %v784
    %v951 = vsel %vm298, %v762, %v786
    %v952 = vsel %vm298, %v764, %v788
    %v953 = vsel %vm298, %v766, %v790
    %v954 = vsel %vm298, %v768, %v792
    %v955 = vsel %vm298, %v770, %v794
    %v956 = vsel %vm298, %v772, %v796
    %v957 = vsel %vm307, %v949, %v806
    %v958 = vsel %vm307, %v950, %v808
    %v959 = vsel %vm307, %v951, %v810
    %v960 = vsel %vm307, %v952, %v812
    %v961 = vsel %vm307, %v953, %v814
    %v962 = vsel %vm307, %v954, %v816
    %v963 = vsel %vm307, %v955, %v818
    %v964 = vsel %vm307, %v956, %v820
    %v965 = vsel %vm316, %v957, %v830
    %v966 = vsel %vm316, %v958, %v832
    %v967 = vsel %vm316, %v959, %v834
    %v968 = vsel %vm316, %v960, %v836
    %v969 = vsel %vm316, %v961, %v838
    %v970 = vsel %vm316, %v962, %v840
    %v971 = vsel %vm316, %v963, %v842
    %v972 = vsel %vm316, %v964, %v844
    %v973 = vsel %vm325, %v965, %v854
    %v974 = vsel %vm325, %v966, %v856
    %v975 = vsel %vm325, %v967, %v858
    %v976 = vsel %vm325, %v968, %v860
    %v977 = vsel %vm325, %v969, %v862
    %v978 = vsel %vm325, %v970, %v864
    %v979 = vsel %vm325, %v971, %v866
    %v980 = vsel %vm325, %v972, %v868
    %v981 = vsel %vm334, %v973, %v878
    %v982 = vsel %vm334, %v974, %v880
    %v983 = vsel %vm334, %v975, %v882
    %v984 = vsel %vm334, %v976, %v884
    %v985 = vsel %vm334, %v977, %v886
    %v986 = vsel %vm334, %v978, %v888
    %v987 = vsel %vm334, %v979, %v890
    %v988 = vsel %vm334, %v980, %v892
    %v989 = vsel %vm343, %v981, %v902
    %v990 = vsel %vm343, %v982, %v904
    %v991 = vsel %vm343, %v983, %v906
    %v992 = vsel %vm343, %v984, %v908
    %v993 = vsel %vm343, %v985, %v910
    %v994 = vsel %vm343, %v986, %v912
    %v995 = vsel %vm343, %v987, %v914
    %v996 = vsel %vm343, %v988, %v916
    %v997 = vsel %vm352, %v989, %v926
    %v998 = vsel %vm352, %v990, %v928
    %v999 = vsel %vm352, %v991, %v930
    %v1000 = vsel %vm352, %v992, %v932
    %v1001 = vsel %vm352, %v993, %v934
    %v1002 = vsel %vm352, %v994, %v936
    %v1003 = vsel %vm352, %v995, %v938
    %v1004 = vsel %vm352, %v996, %v940
    %s1005 = scalar_lea.vmem [#allocation6], 8
    %v1006 = vld [vmem:[%s1005] sm:$0xf]
    %v1007 = vmul.f32 %v997, %v1006
    %v1008 = vmul.f32 %v998, %v1006
    %v1009 = vmul.f32 %v999, %v1006
    %v1010 = vmul.f32 %v1000, %v1006
    %v1011 = vmul.f32 %v1001, %v1006
    %v1012 = vmul.f32 %v1002, %v1006
    %v1013 = vmul.f32 %v1003, %v1006
    %v1014 = vmul.f32 %v1004, %v1006
    %v1015 = vsel %vm370, %v1007, 0.0
    %v1016 = vrot.slane %v1015, 4
    %v1017 = vadd.f32 %v1015, %v1016
    %v1018 = vrot.slane %v1017, 2
    %v1019 = vadd.f32 %v1017, %v1018
    %v1020 = vrot.slane %v1019, 1
    %v1021 = vadd.f32 %v1019, %v1020
    %v1022 = vsel %vm370, %v1008, 0.0
    %v1023 = vrot.slane %v1022, 4
    %v1024 = vadd.f32 %v1022, %v1023
    %v1025 = vrot.slane %v1024, 2
    %v1026 = vadd.f32 %v1024, %v1025
    %v1027 = vrot.slane %v1026, 1
    %v1028 = vadd.f32 %v1026, %v1027
    %v1029 = vsel %vm370, %v1009, 0.0
    %v1030 = vrot.slane %v1029, 4
    %v1031 = vadd.f32 %v1029, %v1030
    %v1032 = vrot.slane %v1031, 2
    %v1033 = vadd.f32 %v1031, %v1032
    %v1034 = vrot.slane %v1033, 1
    %v1035 = vadd.f32 %v1033, %v1034
    %v1036 = vsel %vm370, %v1010, 0.0
    %v1037 = vrot.slane %v1036, 4
    %v1038 = vadd.f32 %v1036, %v1037
    %v1039 = vrot.slane %v1038, 2
    %v1040 = vadd.f32 %v1038, %v1039
    %v1041 = vrot.slane %v1040, 1
    %v1042 = vadd.f32 %v1040, %v1041
    %v1043 = vsel %vm370, %v1011, 0.0
    %v1044 = vrot.slane %v1043, 4
    %v1045 = vadd.f32 %v1043, %v1044
    %v1046 = vrot.slane %v1045, 2
    %v1047 = vadd.f32 %v1045, %v1046
    %v1048 = vrot.slane %v1047, 1
    %v1049 = vadd.f32 %v1047, %v1048
    %v1050 = vsel %vm370, %v1012, 0.0
    %v1051 = vrot.slane %v1050, 4
    %v1052 = vadd.f32 %v1050, %v1051
    %v1053 = vrot.slane %v1052, 2
    %v1054 = vadd.f32 %v1052, %v1053
    %v1055 = vrot.slane %v1054, 1
    %v1056 = vadd.f32 %v1054, %v1055
    %v1057 = vsel %vm370, %v1013, 0.0
    %v1058 = vrot.slane %v1057, 4
    %v1059 = vadd.f32 %v1057, %v1058
    %v1060 = vrot.slane %v1059, 2
    %v1061 = vadd.f32 %v1059, %v1060
    %v1062 = vrot.slane %v1061, 1
    %v1063 = vadd.f32 %v1061, %v1062
    %v1064 = vsel %vm370, %v1014, 0.0
    %v1065 = vrot.slane %v1064, 4
    %v1066 = vadd.f32 %v1064, %v1065
    %v1067 = vrot.slane %v1066, 2
    %v1068 = vadd.f32 %v1066, %v1067
    %v1069 = vrot.slane %v1068, 1
    %v1070 = vadd.f32 %v1068, %v1069
    %v1071 = vadd.f32 %v749, %v1021
    %v1072 = vadd.f32 %v750, %v1028
    %v1073 = vadd.f32 %v751, %v1035
    %v1074 = vadd.f32 %v752, %v1042
    %v1075 = vadd.f32 %v753, %v1049
    %v1076 = vadd.f32 %v754, %v1056
    %v1077 = vadd.f32 %v755, %v1063
    %v1078 = vadd.f32 %v756, %v1070
    %v1079 = vld [vmem:[%s2] sm:$0x1]
    %v1081 = vperm.slane %v1079, 0
    %v1083 = vadd.f32 %v1071, %v1081
    %v1084 = vadd.f32 %v1072, %v1081
    %v1085 = vadd.f32 %v1073, %v1081
    %v1086 = vadd.f32 %v1074, %v1081
    %v1087 = vadd.f32 %v1075, %v1081
    %v1088 = vadd.f32 %v1076, %v1081
    %v1089 = vadd.f32 %v1077, %v1081
    %v1090 = vadd.f32 %v1078, %v1081
    %1091 = vst [vmem:[#allocation8] sm:$0x1] %v1083
    %1092 = vst [vmem:[#allocation8 + $0x1] sm:$0x1] %v1084
    %1093 = vst [vmem:[#allocation8 + $0x2] sm:$0x1] %v1085
    %1094 = vst [vmem:[#allocation8 + $0x3] sm:$0x1] %v1086
    %1095 = vst [vmem:[#allocation8 + $0x4] sm:$0x1] %v1087
    %1096 = vst [vmem:[#allocation8 + $0x5] sm:$0x1] %v1088
    %1097 = vst [vmem:[#allocation8 + $0x6] sm:$0x1] %v1089
    %1098 = vst [vmem:[#allocation8 + $0x7] sm:$0x1] %v1090
    // Predicated region
    $region22: #{tpu_custom_call.1} parent=1 // pred_check
      _
    $region23: #{tpu_custom_call.1} parent=1 // pred_check_branch
      %1100 = sbr.rel (0) target = $region25
    $region24: #{tpu_custom_call.1} parent=1 // pred_region
      %1102 = vsyncadd [#allocation5], 0
      %s1103 = sshll.u32 [#allocation8], 4
      %s1104 = int_to_ptr.vmem [resolvable:$true] %s1103
      %s1105 = sshll.u32 %s3, 4
      %s1106 = int_to_ptr.hbm [resolvable:$true] %s1105
      %1111 = dma.vmem_to_hbm [thread:$0]  %s1104, 128, %s1106, [#allocation5], 16, 16, 1
    $region25: #{tpu_custom_call.1} parent=1 // pred_fallthru
      _
    // Predicated region
    $region26: #{tpu_custom_call.1} parent=1 // pred_check
      _
    $region27: #{tpu_custom_call.1} parent=1 // pred_check_branch
      %1113 = sbr.rel (0) target = $region29
    $region28: #{tpu_custom_call.1} parent=1 // pred_region
      %1115 = dma.done [#allocation5], 128
    $region29: #{tpu_custom_call.1} parent=1 // pred_fallthru
      _
    %1116 = vsyncpa [#allocation4], 1
    %1117 = vsyncpa [#allocation7], 1
    %1118 = vsyncpa [#allocation5], 1

</llo_original>
